<compile_context>
chip_gen: v7x
topology: tpu7x:2x2x1
jax: 0.10.0
libtpu: 0.0.40
codegen_flags: <defaults>
</compile_context>

<pallas_src>
import jax
import jax.numpy as jnp
from jax.experimental import pallas as pl
from jax.experimental.pallas import tpu as pltpu

EPS = 1e-6  # LAYER_NORM = partial(nn.LayerNorm, eps=1e-06) in the reference


def avg_token_head_kernel(x_ref, lnw_ref, lnb_ref, w_ref, b_ref, o_ref):
    # x_ref: (N, tb, D) — token axis first (the reduced dim), full extent in VMEM.
    x = x_ref[...].astype(jnp.float32)
    m = jnp.mean(x, axis=0)                                    # (tb, D) token-mean, f32 acc
    mu = jnp.mean(m, axis=-1, keepdims=True)                   # LayerNorm over last dim
    var = jnp.mean(jnp.square(m - mu), axis=-1, keepdims=True)
    y = (m - mu) * jax.lax.rsqrt(var + EPS) * lnw_ref[...] + lnb_ref[...]
    # bf16 MXU operands, f32 accumulation; bias added in f32.
    o_ref[...] = (
        jnp.dot(y.astype(jnp.bfloat16),
                w_ref[...].astype(jnp.bfloat16),
                preferred_element_type=jnp.float32)
        + b_ref[...]
    )


def avg_token_head(x, ln_w, ln_b, w, b, *, dim=0, class_tile=None, batch_tile=None):
    """x: (N, B, in_dim) with the reduced (token) axis = `dim`; w: (in_dim, num_classes)."""
    if dim != 0:
        x = jnp.moveaxis(x, dim, 0)   # reduced axis to the front; LN/Linear act on the last dim
    N, B, D = x.shape
    num_classes = w.shape[1]

    ln_w2 = ln_w.reshape(1, D).astype(jnp.float32)
    ln_b2 = ln_b.reshape(1, D).astype(jnp.float32)
    b2 = b.reshape(1, num_classes).astype(jnp.float32)

    # Lane-dense class tiling: largest multiple of 128 (<= 1024) dividing num_classes;
    # otherwise a single full-extent tile (always legal, e.g. num_classes = 1000).
    if class_tile is None:
        class_tile = num_classes
        t = min(num_classes - num_classes % 128, 1024)
        while t >= 128:
            if num_classes % t == 0:
                class_tile = t
                break
            t -= 128
    if num_classes % class_tile != 0:
        class_tile = num_classes
    n_class_tiles = num_classes // class_tile

    # Batch tiling (outer grid axis). Default: whole batch resident -> the classifier
    # weight is streamed from HBM exactly once.
    if batch_tile is None or B % batch_tile != 0:
        batch_tile = B
    n_batch_tiles = B // batch_tile

    # VMEM budget from actual block sizes (double-buffering headroom), v7x-safe cap.
    x_bytes = N * batch_tile * D * jnp.dtype(x.dtype).itemsize
    w_bytes = D * class_tile * jnp.dtype(w.dtype).itemsize
    misc_bytes = (2 * D + class_tile + batch_tile * class_tile) * 4
    vmem_limit = int(min(64 * 1024 * 1024,
                         max(16 * 1024 * 1024, 3 * (x_bytes + w_bytes + misc_bytes))))

    return pl.pallas_call(
        avg_token_head_kernel,
        out_shape=jax.ShapeDtypeStruct((B, num_classes), jnp.float32),
        grid=(n_batch_tiles, n_class_tiles),
        in_specs=[
            pl.BlockSpec((N, batch_tile, D), lambda i, j: (0, i, 0)),   # activations (native dtype)
            pl.BlockSpec((1, D), lambda i, j: (0, 0)),                  # LN weight
            pl.BlockSpec((1, D), lambda i, j: (0, 0)),                  # LN bias
            pl.BlockSpec((D, class_tile), lambda i, j: (0, j)),         # classifier weight tile
            pl.BlockSpec((1, class_tile), lambda i, j: (0, j)),         # classifier bias tile
        ],
        out_specs=pl.BlockSpec((batch_tile, class_tile), lambda i, j: (i, j)),
        compiler_params=pltpu.CompilerParams(
            # every (batch_tile, class_tile) output block is independent -> megacore sharding OK
            dimension_semantics=("parallel", "parallel"),
            vmem_limit_bytes=vmem_limit,
        ),
    )(x, ln_w2, ln_b2, w, b2)


if __name__ == "__main__":
    # Small shapes consistent with AvgTokenHead: seq=8, batch=2, in_dim=32, num_classes=128.
    N, B, in_dim, num_classes = 8, 2, 32, 128

    key = jax.random.PRNGKey(0)
    k1, k2, k3 = jax.random.split(key, 3)
    x = jax.random.normal(k1, (N, B, in_dim), jnp.float32)
    ln_w = jnp.ones((in_dim,), jnp.float32)
    ln_b = jnp.zeros((in_dim,), jnp.float32)
    w = jax.random.normal(k2, (in_dim, num_classes), jnp.float32) * 0.02
    b = jax.random.normal(k3, (num_classes,), jnp.float32) * 0.02

    out = avg_token_head(x, ln_w, ln_b, w, b, dim=0)
    jax.block_until_ready(out)
    assert out.shape == (B, num_classes)

    # Plain-JAX reference (f32) — bf16 MXU operands introduce only small error at this scale.
    m = x.mean(axis=0)
    mu = m.mean(-1, keepdims=True)
    var = ((m - mu) ** 2).mean(-1, keepdims=True)
    ref = ((m - mu) * jax.lax.rsqrt(var + EPS) * ln_w + ln_b) @ w + b
    assert jnp.allclose(out, ref, atol=2e-2, rtol=2e-2), float(jnp.abs(out - ref).max())

    print("KERNEL_OK")
</pallas_src>

<mosaic_0001>
module attributes {stable_mosaic.version = 11 : i64} {
  func.func @avg_token_head_kernel(%arg0: i32, %arg1: i32, %arg2: memref<8x2x32xf32, #tpu.memory_space<vmem>>, %arg3: memref<1x32xf32, #tpu.memory_space<vmem>>, %arg4: memref<1x32xf32, #tpu.memory_space<vmem>>, %arg5: memref<32x128xf32, #tpu.memory_space<vmem>>, %arg6: memref<1x128xf32, #tpu.memory_space<vmem>>, %arg7: memref<2x128xf32, #tpu.memory_space<vmem>>) attributes {dimension_semantics = [#tpu.dimension_semantics<parallel>, #tpu.dimension_semantics<parallel>], iteration_bounds = array<i64: 1, 1>, scalar_prefetch = 0 : i64, scratch_operands = 0 : i64, tpu.core_type = #tpu.core_type<tc>, window_params = [{transform_indices = @transform_0, window_bounds = array<i64: 8, 2, 32>}, {pipeline_mode = #tpu.pipeline_mode<synchronous>, transform_indices = @transform_1, window_bounds = array<i64: 1, 32>}, {pipeline_mode = #tpu.pipeline_mode<synchronous>, transform_indices = @transform_2, window_bounds = array<i64: 1, 32>}, {transform_indices = @transform_3, window_bounds = array<i64: 32, 128>}, {transform_indices = @transform_4, window_bounds = array<i64: 1, 128>}, {transform_indices = @transform_5, window_bounds = array<i64: 2, 128>}]} {
    %c0 = arith.constant 0 : index
    %c0_0 = arith.constant 0 : index
    %c0_1 = arith.constant 0 : index
    %0 = vector.load %arg2[%c0, %c0_0, %c0_1] : memref<8x2x32xf32, #tpu.memory_space<vmem>>, vector<8x2x32xf32>
    %cst = arith.constant dense<0.000000e+00> : vector<2x32xf32>
    %1 = vector.multi_reduction <add>, %0, %cst [0] : vector<8x2x32xf32> to vector<2x32xf32>
    %cst_2 = arith.constant 8.000000e+00 : f32
    %2 = vector.broadcast %cst_2 : f32 to vector<2x32xf32>
    %3 = arith.divf %1, %2 : vector<2x32xf32>
    %cst_3 = arith.constant dense<0.000000e+00> : vector<2xf32>
    %4 = vector.multi_reduction <add>, %3, %cst_3 [1] : vector<2x32xf32> to vector<2xf32>
    %5 = vector.shape_cast %4 : vector<2xf32> to vector<2x1xf32>
    %cst_4 = arith.constant 3.200000e+01 : f32
    %6 = vector.broadcast %cst_4 : f32 to vector<2x1xf32>
    %7 = arith.divf %5, %6 : vector<2x1xf32>
    %8 = vector.broadcast %7 : vector<2x1xf32> to vector<2x32xf32>
    %9 = arith.subf %3, %8 : vector<2x32xf32>
    %10 = arith.mulf %9, %9 : vector<2x32xf32>
    %cst_5 = arith.constant dense<0.000000e+00> : vector<2xf32>
    %11 = vector.multi_reduction <add>, %10, %cst_5 [1] : vector<2x32xf32> to vector<2xf32>
    %12 = vector.shape_cast %11 : vector<2xf32> to vector<2x1xf32>
    %cst_6 = arith.constant 3.200000e+01 : f32
    %13 = vector.broadcast %cst_6 : f32 to vector<2x1xf32>
    %14 = arith.divf %12, %13 : vector<2x1xf32>
    %15 = vector.broadcast %7 : vector<2x1xf32> to vector<2x32xf32>
    %16 = arith.subf %3, %15 : vector<2x32xf32>
    %cst_7 = arith.constant 9.99999997E-7 : f32
    %17 = vector.broadcast %cst_7 : f32 to vector<2x1xf32>
    %18 = arith.addf %14, %17 : vector<2x1xf32>
    %19 = math.rsqrt %18 : vector<2x1xf32>
    %20 = vector.broadcast %19 : vector<2x1xf32> to vector<2x32xf32>
    %21 = arith.mulf %16, %20 : vector<2x32xf32>
    %c0_8 = arith.constant 0 : index
    %c0_9 = arith.constant 0 : index
    %22 = vector.load %arg3[%c0_8, %c0_9] : memref<1x32xf32, #tpu.memory_space<vmem>>, vector<1x32xf32>
    %23 = vector.broadcast %22 : vector<1x32xf32> to vector<2x32xf32>
    %24 = arith.mulf %21, %23 : vector<2x32xf32>
    %c0_10 = arith.constant 0 : index
    %c0_11 = arith.constant 0 : index
    %25 = vector.load %arg4[%c0_10, %c0_11] : memref<1x32xf32, #tpu.memory_space<vmem>>, vector<1x32xf32>
    %26 = vector.broadcast %25 : vector<1x32xf32> to vector<2x32xf32>
    %27 = arith.addf %24, %26 : vector<2x32xf32>
    %28 = arith.truncf %27 : vector<2x32xf32> to vector<2x32xbf16>
    %c0_12 = arith.constant 0 : index
    %c0_13 = arith.constant 0 : index
    %29 = vector.load %arg5[%c0_12, %c0_13] : memref<32x128xf32, #tpu.memory_space<vmem>>, vector<32x128xf32>
    %30 = arith.truncf %29 : vector<32x128xf32> to vector<32x128xbf16>
    %cst_14 = arith.constant dense<0.000000e+00> : vector<2x128xf32>
    %31 = tpu.matmul %28, %30, %cst_14 {dimension_numbers = #tpu.dot_dimension_numbers<[1], [0], [0], [1], [0, 0, 1, 1], [], []>} : vector<2x32xbf16>, vector<32x128xbf16>, vector<2x128xf32> -> vector<2x128xf32>
    %c0_15 = arith.constant 0 : index
    %c0_16 = arith.constant 0 : index
    %32 = vector.load %arg6[%c0_15, %c0_16] : memref<1x128xf32, #tpu.memory_space<vmem>>, vector<1x128xf32>
    %33 = vector.broadcast %32 : vector<1x128xf32> to vector<2x128xf32>
    %34 = arith.addf %31, %33 : vector<2x128xf32>
    %c0_17 = arith.constant 0 : index
    %c0_18 = arith.constant 0 : index
    %35 = vector.load %arg7[%c0_17, %c0_18] : memref<2x128xf32, #tpu.memory_space<vmem>>, vector<2x128xf32>
    tpu.vector_store %arg7[%c0_17, %c0_18], %34 {strides = array<i32>} : memref<2x128xf32, #tpu.memory_space<vmem>>, vector<2x128xf32>,
    return
  }
  func.func @transform_0(%arg0: i32, %arg1: i32) -> (i32, i32, i32) {
    %c0_i32 = arith.constant 0 : i32
    %c0_i32_0 = arith.constant 0 : i32
    %c0_i32_1 = arith.constant 0 : i32
    return %c0_i32, %arg0, %c0_i32_0 : i32, i32, i32
  }
  func.func @transform_1(%arg0: i32, %arg1: i32) -> (i32, i32) {
    %c0_i32 = arith.constant 0 : i32
    %c0_i32_0 = arith.constant 0 : i32
    %c0_i32_1 = arith.constant 0 : i32
    return %c0_i32, %c0_i32_0 : i32, i32
  }
  func.func @transform_2(%arg0: i32, %arg1: i32) -> (i32, i32) {
    %c0_i32 = arith.constant 0 : i32
    %c0_i32_0 = arith.constant 0 : i32
    %c0_i32_1 = arith.constant 0 : i32
    return %c0_i32, %c0_i32_0 : i32, i32
  }
  func.func @transform_3(%arg0: i32, %arg1: i32) -> (i32, i32) {
    %c0_i32 = arith.constant 0 : i32
    %c0_i32_0 = arith.constant 0 : i32
    return %c0_i32, %arg1 : i32, i32
  }
  func.func @transform_4(%arg0: i32, %arg1: i32) -> (i32, i32) {
    %c0_i32 = arith.constant 0 : i32
    %c0_i32_0 = arith.constant 0 : i32
    return %c0_i32, %arg1 : i32, i32
  }
  func.func @transform_5(%arg0: i32, %arg1: i32) -> (i32, i32) {
    %c0_i32 = arith.constant 0 : i32
    return %arg0, %arg1 : i32, i32
  }
}

</mosaic_0001>

<llo_original>
// kernel: tpu_custom_call.1
$region0: #{tpu_custom_call.1}
  #allocation0 [shape = 'u32[]', space=smem, size = 0x4, offset = 0x4, fixed_abs, tag = 'smem constant byte address 0x4 - core index']
  #allocation1 [shape = 'u32[144,128]{1,0:T(1,128)}', space=vmem, size = 0x12000, scoped, tag = 'internal scratch']
  %s0 = inlined_call_operand.hbm [shape: f32[8,2,32], index: 0, kind: input, shape index: {}]
  %s1 = inlined_call_operand.vmem [shape: f32[1,32], index: 1, kind: input, shape index: {}]
  %s2 = inlined_call_operand.vmem [shape: f32[1,32], index: 2, kind: input, shape index: {}]
  %s3 = inlined_call_operand.hbm [shape: f32[32,128], index: 3, kind: input, shape index: {}]
  %s4 = inlined_call_operand.vmem [shape: f32[1,128], index: 4, kind: input, shape index: {}]
  %s5 = inlined_call_operand.hbm [shape: f32[2,128], index: 5, kind: output, shape index: {}]
  %s6 = sld [smem:[#allocation0]]
  $region38: #{tpu_custom_call.1} parent=0
    _
  %s8 = ssub.s32 1, %s6
  %s9 = scalar_select 0, %s8, %s6
  $region1: #{tpu_custom_call.1} parent=0
    #allocation2 [shape = 'u8[8192]{0}', space=vmem, size = 0x2000, scoped, tag = 'input window, operand 0, single buffered']
    #allocation3 [shape = 's32[1]{0}', space=sflag, size = 0x4, scoped, tag = 'scoped memory for tpu_custom_call.1']
    #allocation4 [shape = 's32[1]{0}', space=sflag, size = 0x4, scoped, tag = 'scoped memory for tpu_custom_call.1']
    #allocation5 [shape = 'u8[16384]{0}', space=vmem, size = 0x4000, scoped, tag = 'input window, operand 3, single buffered']
    #allocation6 [shape = 's32[1]{0}', space=sflag, size = 0x4, scoped, tag = 'scoped memory for tpu_custom_call.1']
    #allocation7 [shape = 'u8[1024]{0}', space=vmem, size = 0x400, scoped, tag = 'output window, operand 0, single buffered']
    %10 = vsyncpa [#allocation3], 0
    %11 = vsyncpa [#allocation6], 0
    %12 = vsyncpa [#allocation4], 0
    // Predicated region
    $region2: #{tpu_custom_call.1} parent=1 // pred_check
      _
    $region3: #{tpu_custom_call.1} parent=1 // pred_check_branch
      %14 = sbr.rel (0) target = $region5
    $region4: #{tpu_custom_call.1} parent=1 // pred_region
      %s16 = ssub.s32 256, 256
      %17 = vsyncadd [#allocation3], %s16
      %s18 = sshll.u32 [#allocation2], 4
      %s19 = int_to_ptr.vmem [resolvable:$true] %s18
      %24 = dma.hbm_to_vmem [thread:$0]  %s0, 256, %s19, [#allocation3], 32, 32, 2
    $region5: #{tpu_custom_call.1} parent=1 // pred_fallthru
      _
    // Predicated region
    $region6: #{tpu_custom_call.1} parent=1 // pred_check
      _
    $region7: #{tpu_custom_call.1} parent=1 // pred_check_branch
      %26 = sbr.rel (0) target = $region9
    $region8: #{tpu_custom_call.1} parent=1 // pred_region
      _
    $region9: #{tpu_custom_call.1} parent=1 // pred_fallthru
      _
    // Predicated region
    $region10: #{tpu_custom_call.1} parent=1 // pred_check
      _
    $region11: #{tpu_custom_call.1} parent=1 // pred_check_branch
      %28 = sbr.rel (0) target = $region13
    $region12: #{tpu_custom_call.1} parent=1 // pred_region
      _
    $region13: #{tpu_custom_call.1} parent=1 // pred_fallthru
      _
    // Predicated region
    $region14: #{tpu_custom_call.1} parent=1 // pred_check
      _
    $region15: #{tpu_custom_call.1} parent=1 // pred_check_branch
      %30 = sbr.rel (0) target = $region17
    $region16: #{tpu_custom_call.1} parent=1 // pred_region
      %s32 = ssub.s32 512, 512
      %33 = vsyncadd [#allocation6], %s32
      %s34 = sshll.u32 [#allocation5], 4
      %s35 = int_to_ptr.vmem [resolvable:$true] %s34
      %40 = dma.hbm_to_vmem [thread:$0]  %s3, 512, %s35, [#allocation6], 128, 128, 8
    $region17: #{tpu_custom_call.1} parent=1 // pred_fallthru
      _
    // Predicated region
    $region18: #{tpu_custom_call.1} parent=1 // pred_check
      _
    $region19: #{tpu_custom_call.1} parent=1 // pred_check_branch
      %42 = sbr.rel (0) target = $region21
    $region20: #{tpu_custom_call.1} parent=1 // pred_region
      _
    $region21: #{tpu_custom_call.1} parent=1 // pred_fallthru
      _
    // Predicated region
    $region22: #{tpu_custom_call.1} parent=1 // pred_check
      _
    $region23: #{tpu_custom_call.1} parent=1 // pred_check_branch
      %44 = sbr.rel (0) target = $region25
    $region24: #{tpu_custom_call.1} parent=1 // pred_region
      %45 = dma.done [#allocation3], 256
    $region25: #{tpu_custom_call.1} parent=1 // pred_fallthru
      _
    // Predicated region
    $region26: #{tpu_custom_call.1} parent=1 // pred_check
      _
    $region27: #{tpu_custom_call.1} parent=1 // pred_check_branch
      %47 = sbr.rel (0) target = $region29
    $region28: #{tpu_custom_call.1} parent=1 // pred_region
      %48 = dma.done [#allocation6], 512
    $region29: #{tpu_custom_call.1} parent=1 // pred_fallthru
      _
    %v50 = vld [vmem:[#allocation2] sm:$0x3]
    %v51 = vld [vmem:[#allocation2 + $0x2] sm:$0x3]
    %v52 = vld [vmem:[#allocation2 + $0x4] sm:$0x3]
    %v53 = vld [vmem:[#allocation2 + $0x6] sm:$0x3]
    %v54 = vld [vmem:[#allocation2 + $0x8] sm:$0x3]
    %v55 = vld [vmem:[#allocation2 + $0xa] sm:$0x3]
    %v56 = vld [vmem:[#allocation2 + $0xc] sm:$0x3]
    %v57 = vld [vmem:[#allocation2 + $0xe] sm:$0x3]
    %vm58 = vcmask 254976
    %v59 = vsel %vm58, %v50, 0.0
    %v60 = vsel %vm58, %v51, 0.0
    %v61 = vadd.f32 %v59, %v60
    %v62 = vsel %vm58, %v52, 0.0
    %v63 = vadd.f32 %v61, %v62
    %v64 = vsel %vm58, %v53, 0.0
    %v65 = vadd.f32 %v63, %v64
    %v66 = vsel %vm58, %v54, 0.0
    %v67 = vadd.f32 %v65, %v66
    %v68 = vsel %vm58, %v55, 0.0
    %v69 = vadd.f32 %v67, %v68
    %v70 = vsel %vm58, %v56, 0.0
    %v71 = vadd.f32 %v69, %v70
    %v72 = vsel %vm58, %v57, 0.0
    %v73 = vadd.f32 %v71, %v72
    %v74 = vrcp.pop 8.0
    %v75 = vmul.f32 %v73, %v74
    %v76 = vsel %vm58, %v75, 0.0
    %77 = vadd.xlane.f32.xlu0 %v76
    %v78 = vpop.xlane.xlu0 %77
    %v79 = vrcp.pop 32.0
    %v80 = vmul.f32 %v78, %v79
    %v81 = vsub.f32 %v75, %v80
    %v82 = vmul.f32 %v81, %v81
    %v83 = vsel %vm58, %v82, 0.0
    %84 = vadd.xlane.f32.xlu0 %v83
    %v85 = vpop.xlane.xlu0 %84
    %v86 = vmul.f32 %v85, %v79
    %v87 = vadd.f32 %v86, 1e-06
    %v88 = vrsqrt.pop %v87
    %v89 = vmul.f32 %v81, %v88
    %v90 = vld [vmem:[%s1] sm:$0x1]
    %v92 = vlaneseq
    %v93 = vshrl.u32 %v92, 7
    %v94 = vsub.s32 0, %v93
    %v95 = vrot.slane %v90, %v94
    %v97 = vmul.f32 %v89, %v95
    %v98 = vld [vmem:[%s2] sm:$0x1]
    %v100 = vlaneseq
    %v101 = vshrl.u32 %v100, 7
    %v102 = vsub.s32 0, %v101
    %v103 = vrot.slane %v98, %v102
    %v105 = vadd.f32 %v97, %v103
    %v106 = vpack.c.bf16 %v105, %v105
    %v107 = vld [vmem:[#allocation5] sm:$0xff]
    %v108 = vld [vmem:[#allocation5 + $0x8] sm:$0xff]
    %v109 = vld [vmem:[#allocation5 + $0x10] sm:$0xff]
    %v110 = vld [vmem:[#allocation5 + $0x18] sm:$0xff]
    %v111 = vpack.c.bf16 %v108, %v107
    %v112 = vpack.c.bf16 %v110, %v109
    %v113 = vld [vmem:[%s4] sm:$0x1]
    %v115 = vlaneseq
    %v116 = vshrl.u32 %v115, 7
    %v117 = vsub.s32 0, %v116
    %v118 = vrot.slane %v113, %v117
    %vm120 = vcmask 261120
    %v122 = vsel %vm120, %v106, 0
    %124 = vmatprep.subr.bf16.mxu0 0
    %125 = vmatpush1.bf16.msra.mxu0 %v111
    %126 = vmatprep.subr.bf16.mxu0 0
    %127 = vmatpush1.bf16.msra.mxu0 %v112
    %128 = vmatprep.subr.bf16.mxu0 0
    %129 = vmatpush1.bf16.msra.mxu0 0
    %130 = vmatprep.subr.bf16.mxu0 0
    %131 = vmatpush1.bf16.msra.mxu0 0
    %132 = vmatprep.subr.bf16.mxu0 0
    %133 = vmatpush1.bf16.msra.mxu0 0
    %134 = vmatprep.subr.bf16.mxu0 0
    %135 = vmatpush1.bf16.msra.mxu0 0
    %136 = vmatprep.subr.bf16.mxu0 0
    %137 = vmatpush1.bf16.msra.mxu0 0
    %138 = vmatprep.subr.bf16.mxu0 0
    %139 = vmatpush1.bf16.msra.mxu0 0
    %140 = vmatprep.subr.bf16.mxu0 0
    %141 = vmatpush1.bf16.msra.mxu0 0
    %142 = vmatprep.subr.bf16.mxu0 0
    %143 = vmatpush1.bf16.msra.mxu0 0
    %144 = vmatprep.subr.bf16.mxu0 0
    %145 = vmatpush1.bf16.msra.mxu0 0
    %146 = vmatprep.subr.bf16.mxu0 0
    %147 = vmatpush1.bf16.msra.mxu0 0
    %148 = vmatprep.subr.bf16.mxu0 0
    %149 = vmatpush1.bf16.msra.mxu0 0
    %150 = vmatprep.subr.bf16.mxu0 0
    %151 = vmatpush1.bf16.msra.mxu0 0
    %152 = vmatprep.subr.bf16.mxu0 0
    %153 = vmatpush1.bf16.msra.mxu0 0
    %154 = vmatprep.subr.bf16.mxu0 0
    %155 = vmatpush1.bf16.msra.mxu0 0
    %156 = vmatprep.mubr.bf16.mxu0 0
    %157 = vmatmul.mubr.bf16.gmra.mrb[0].mxu0 %v122
    %v158 = vpop.f32.mrb[0].mxu0
    %v159 = vadd.f32 %v118, %v158
    %v160 = vpop.f32.mrb[0].mxu0
    %v161 = vpop.f32.mrb[0].mxu0
    %v162 = vpop.f32.mrb[0].mxu0
    %163 = vdwg.mxu0
    %164 = vst [vmem:[#allocation7] sm:$0x3] %v159
    // Predicated region
    $region30: #{tpu_custom_call.1} parent=1 // pred_check
      _
    $region31: #{tpu_custom_call.1} parent=1 // pred_check_branch
      %166 = sbr.rel (0) target = $region33
    $region32: #{tpu_custom_call.1} parent=1 // pred_region
      %s168 = ssub.s32 32, 32
      %169 = vsyncadd [#allocation4], %s168
      %s171 = sshll.u32 [#allocation7], 4
      %s172 = int_to_ptr.vmem [resolvable:$true] %s171
      %174 = dma.vmem_to_hbm [thread:$0]  %s172, 32, %s5, [#allocation4]
    $region33: #{tpu_custom_call.1} parent=1 // pred_fallthru
      _
    // Predicated region
    $region34: #{tpu_custom_call.1} parent=1 // pred_check
      _
    $region35: #{tpu_custom_call.1} parent=1 // pred_check_branch
      %176 = sbr.rel (0) target = $region37
    $region36: #{tpu_custom_call.1} parent=1 // pred_region
      %177 = dma.done [#allocation4], 32
    $region37: #{tpu_custom_call.1} parent=1 // pred_fallthru
      _
    %178 = vsyncpa [#allocation3], 1
    %179 = vsyncpa [#allocation6], 1
    %180 = vsyncpa [#allocation4], 1

</llo_original>
